<compile_context>
chip_gen: v6e
topology: v6e:2x2x1
jax: 0.10.0
libtpu: 0.0.40
codegen_flags: <defaults>
</compile_context>

<pallas_src>
import functools

import jax
import jax.numpy as jnp
from jax.experimental import pallas as pl
from jax.experimental.pallas import tpu as pltpu


_BLOCK_BYTES = 2 * 1024 * 1024        # per-buffer block target
_FUSED_MAX_BYTES = 1 * 1024 * 1024    # f32 working-set limit for fused path
_VMEM_LIMIT = 32 * 1024 * 1024        # safe scoped-VMEM limit on v5e/v6e/v7x


# ----------------------------- tile selection --------------------------------

def _choose_tiles_2d(n_rows, n_cols, itemsize, block_bytes):
    """Tiles for a (rows, cols) slab: lane tile full (contiguous DMA) when it
    fits the byte budget with >=8 rows, else a multiple of 128; row tile a
    multiple of 8 sized by the remaining budget."""
    block_bytes = max(block_bytes, 8 * 128 * itemsize)
    if n_cols * 8 * itemsize <= block_bytes:
        col_t = n_cols                                   # full dim (always legal)
    else:
        col_t = max(128, (block_bytes // (8 * itemsize) // 128) * 128)
    rows_budget = max(8, block_bytes // (col_t * itemsize))
    if n_rows <= rows_budget:
        row_t = n_rows                                   # full dim (always legal)
    else:
        row_t = max(8, (min(rows_budget, 1024) // 8) * 8)
    return row_t, col_t


def _choose_fc_tile(n_rows, n_feat, itemsize, block_bytes):
    block_bytes = max(block_bytes, 8 * n_feat * itemsize)
    rows_budget = max(8, block_bytes // (n_feat * itemsize))
    if n_rows <= rows_budget:
        return n_rows
    return max(8, (min(rows_budget, 1024) // 8) * 8)


# ------------------------------- kernels --------------------------------------

def _stats_cols_kernel(x_ref, sum_ref, sq_ref, *, n_rows, n_cols,
                       mask_rows, mask_cols):
    """x_ref: (row_t, col_t) slab of (N*C, HW).  Per-row sum / sum-sq
    accumulated into (1, row_t, 1) output blocks resident across the inner
    (arbitrary) hw grid axis."""
    hi = pl.program_id(2)
    row_t, col_t = x_ref.shape
    x = x_ref[...].astype(jnp.float32)

    if mask_rows or mask_cols:
        mask = None
        if mask_rows:
            rid = (jax.lax.broadcasted_iota(jnp.int32, (row_t, col_t), 0)
                   + pl.program_id(0) * row_t)
            mask = rid < n_rows
        if mask_cols:
            col0 = (pl.program_id(1) * pl.num_programs(2) + hi) * col_t
            cid = jax.lax.broadcasted_iota(jnp.int32, (row_t, col_t), 1) + col0
            cmask = cid < n_cols
            mask = cmask if mask is None else (mask & cmask)
        x = jnp.where(mask, x, 0.0)

    ps = jnp.sum(x, axis=1, keepdims=True)           # (row_t, 1)
    pq = jnp.sum(x * x, axis=1, keepdims=True)       # (row_t, 1)

    @pl.when(hi == 0)
    def _():
        sum_ref[0] = ps
        sq_ref[0] = pq

    @pl.when(hi != 0)
    def _():
        sum_ref[0] = sum_ref[0] + ps
        sq_ref[0] = sq_ref[0] + pq


def _stats_rows_kernel(x_ref, sum_ref, sq_ref, *, n_rows, mask_rows):
    """x_ref: (tn, F).  Per-feature sum / sum-sq accumulated into (1, 1, F)
    lane-dense output blocks resident across the inner (arbitrary) row axis."""
    o = pl.program_id(0)
    i = pl.program_id(1)
    tn, f = x_ref.shape
    x = x_ref[...].astype(jnp.float32)

    if mask_rows:
        row0 = (o * pl.num_programs(1) + i) * tn
        rid = jax.lax.broadcasted_iota(jnp.int32, (tn, f), 0) + row0
        x = jnp.where(rid < n_rows, x, 0.0)

    ps = jnp.sum(x, axis=0, keepdims=True)            # (1, F)
    pq = jnp.sum(x * x, axis=0, keepdims=True)        # (1, F)

    @pl.when(i == 0)
    def _():
        sum_ref[0] = ps
        sq_ref[0] = pq

    @pl.when(i != 0)
    def _():
        sum_ref[0] = sum_ref[0] + ps
        sq_ref[0] = sq_ref[0] + pq


def _norm_kernel(x_ref, scale_ref, shift_ref, y_ref):
    """Fused per-element multiply-add; scale/shift broadcast from (row_t, 1)
    (NCHW path) or (1, F) (FC path)."""
    x = x_ref[...].astype(jnp.float32)
    y_ref[...] = (x * scale_ref[...] + shift_ref[...]).astype(y_ref.dtype)


def _fused_nchw_kernel(x_ref, g_ref, b_ref, y_ref, mean_ref, var_ref, *, eps):
    """Whole-tensor-resident path.  x_ref: (N, C, HW); g/b: (1, C, 1)."""
    x = x_ref[...].astype(jnp.float32)
    n = x.shape[0] * x.shape[2]
    s = jnp.sum(jnp.sum(x, axis=2, keepdims=True), axis=0, keepdims=True)
    mean = s * (1.0 / n)                               # (1, C, 1)
    xc = x - mean
    v = jnp.sum(jnp.sum(xc * xc, axis=2, keepdims=True),
                axis=0, keepdims=True) * (1.0 / n)     # (1, C, 1)
    inv = jax.lax.rsqrt(v + eps)
    scale = inv * g_ref[...].astype(jnp.float32)
    y_ref[...] = (xc * scale + b_ref[...].astype(jnp.float32)).astype(y_ref.dtype)
    mean_ref[...] = mean[0]
    var_ref[...] = v[0]


def _fused_nf_kernel(x_ref, g_ref, b_ref, y_ref, mean_ref, var_ref, *, eps):
    """Whole-tensor-resident FC path.  x_ref: (N, F); g/b: (1, F)."""
    x = x_ref[...].astype(jnp.float32)
    n = x.shape[0]
    mean = jnp.sum(x, axis=0, keepdims=True) * (1.0 / n)
    xc = x - mean
    var = jnp.sum(xc * xc, axis=0, keepdims=True) * (1.0 / n)
    inv = jax.lax.rsqrt(var + eps)
    y_ref[...] = (xc * (inv * g_ref[...].astype(jnp.float32))
                  + b_ref[...].astype(jnp.float32)).astype(y_ref.dtype)
    mean_ref[...] = mean
    var_ref[...] = var


# --------------------------- pallas_call wrappers ------------------------------

def _stats_cols(x2, block_bytes):
    """Per-row sum / sum-of-squares of a (R, HW) slab (reduce over lanes)."""
    R, HW = x2.shape
    row_t, col_t = _choose_tiles_2d(R, HW, x2.dtype.itemsize, block_bytes)
    n_r = pl.cdiv(R, row_t)
    n_c = pl.cdiv(HW, col_t)
    n_co = 2 if (n_c >= 2 and n_c % 2 == 0) else 1     # extra parallel axis (v7x)
    n_ci = n_c // n_co
    mask_rows = (n_r * row_t != R)
    mask_cols = (n_c * col_t != HW)

    kern = functools.partial(_stats_cols_kernel, n_rows=R, n_cols=HW,
                             mask_rows=mask_rows, mask_cols=mask_cols)
    sums, sqs = pl.pallas_call(
        kern,
        out_shape=(jax.ShapeDtypeStruct((n_co, R, 1), jnp.float32),
                   jax.ShapeDtypeStruct((n_co, R, 1), jnp.float32)),
        grid=(n_r, n_co, n_ci),
        in_specs=[pl.BlockSpec((row_t, col_t),
                               lambda r, ho, hi: (r, ho * n_ci + hi))],
        out_specs=(pl.BlockSpec((1, row_t, 1), lambda r, ho, hi: (ho, r, 0)),
                   pl.BlockSpec((1, row_t, 1), lambda r, ho, hi: (ho, r, 0))),
        compiler_params=pltpu.CompilerParams(
            dimension_semantics=("parallel", "parallel", "arbitrary"),
            vmem_limit_bytes=_VMEM_LIMIT),
    )(x2)
    return jnp.sum(sums, axis=0)[:, 0], jnp.sum(sqs, axis=0)[:, 0]     # (R,), (R,)


def _stats_fc(x, block_bytes):
    """Per-feature sum / sum-of-squares of an (N, F) slab (reduce over rows)."""
    N, F = x.shape
    tn = _choose_fc_tile(N, F, x.dtype.itemsize, block_bytes)
    n_t = pl.cdiv(N, tn)
    n_o = 2 if (n_t >= 2 and n_t % 2 == 0) else 1      # extra parallel axis (v7x)
    n_i = n_t // n_o
    mask_rows = (n_t * tn != N)

    kern = functools.partial(_stats_rows_kernel, n_rows=N, mask_rows=mask_rows)
    sums, sqs = pl.pallas_call(
        kern,
        out_shape=(jax.ShapeDtypeStruct((n_o, 1, F), jnp.float32),
                   jax.ShapeDtypeStruct((n_o, 1, F), jnp.float32)),
        grid=(n_o, n_i),
        in_specs=[pl.BlockSpec((tn, F), lambda o, i: (o * n_i + i, 0))],
        out_specs=(pl.BlockSpec((1, 1, F), lambda o, i: (o, 0, 0)),
                   pl.BlockSpec((1, 1, F), lambda o, i: (o, 0, 0))),
        compiler_params=pltpu.CompilerParams(
            dimension_semantics=("parallel", "arbitrary"),
            vmem_limit_bytes=_VMEM_LIMIT),
    )(x)
    return jnp.sum(sums, axis=(0, 1)), jnp.sum(sqs, axis=(0, 1))       # (F,), (F,)


def _norm_2d(x2, scale_rows, shift_rows, block_bytes):
    """y = x * scale + shift on a (R, HW) slab; scale/shift are (R, 1)."""
    R, HW = x2.shape
    row_t, col_t = _choose_tiles_2d(R, HW, x2.dtype.itemsize, block_bytes)
    n_r = pl.cdiv(R, row_t)
    n_c = pl.cdiv(HW, col_t)
    return pl.pallas_call(
        _norm_kernel,
        out_shape=jax.ShapeDtypeStruct((R, HW), x2.dtype),
        grid=(n_r, n_c),
        in_specs=[pl.BlockSpec((row_t, col_t), lambda r, c: (r, c)),
                  pl.BlockSpec((row_t, 1), lambda r, c: (r, 0)),
                  pl.BlockSpec((row_t, 1), lambda r, c: (r, 0))],
        out_specs=pl.BlockSpec((row_t, col_t), lambda r, c: (r, c)),
        compiler_params=pltpu.CompilerParams(
            dimension_semantics=("parallel", "parallel"),
            vmem_limit_bytes=_VMEM_LIMIT),
    )(x2, scale_rows, shift_rows)


def _norm_fc(x, scale_f, shift_f, block_bytes):
    """y = x * scale + shift on an (N, F) slab; scale/shift are (1, F)."""
    N, F = x.shape
    tn = _choose_fc_tile(N, F, x.dtype.itemsize, block_bytes)
    n_t = pl.cdiv(N, tn)
    return pl.pallas_call(
        _norm_kernel,
        out_shape=jax.ShapeDtypeStruct((N, F), x.dtype),
        grid=(n_t,),
        in_specs=[pl.BlockSpec((tn, F), lambda t: (t, 0)),
                  pl.BlockSpec((1, F), lambda t: (0, 0)),
                  pl.BlockSpec((1, F), lambda t: (0, 0))],
        out_specs=pl.BlockSpec((tn, F), lambda t: (t, 0)),
        compiler_params=pltpu.CompilerParams(
            dimension_semantics=("parallel",),
            vmem_limit_bytes=_VMEM_LIMIT),
    )(x, scale_f, shift_f)


def _fused_nchw(x3, gamma_c, beta_c, eps):
    N, C, HW = x3.shape
    kern = functools.partial(_fused_nchw_kernel, eps=eps)
    y3, mean, var = pl.pallas_call(
        kern,
        out_shape=(jax.ShapeDtypeStruct((N, C, HW), x3.dtype),
                   jax.ShapeDtypeStruct((C, 1), jnp.float32),
                   jax.ShapeDtypeStruct((C, 1), jnp.float32)),
        in_specs=[pl.BlockSpec(memory_space=pltpu.MemorySpace.VMEM)] * 3,
        out_specs=(pl.BlockSpec(memory_space=pltpu.MemorySpace.VMEM),) * 3,
    )(x3, gamma_c.reshape(1, C, 1), beta_c.reshape(1, C, 1))
    return y3, mean[:, 0], var[:, 0]                   # y3, (C,), (C,)


def _fused_nf(x, gamma_f, beta_f, eps):
    N, F = x.shape
    kern = functools.partial(_fused_nf_kernel, eps=eps)
    y, mean, var = pl.pallas_call(
        kern,
        out_shape=(jax.ShapeDtypeStruct((N, F), x.dtype),
                   jax.ShapeDtypeStruct((1, F), jnp.float32),
                   jax.ShapeDtypeStruct((1, F), jnp.float32)),
        in_specs=[pl.BlockSpec(memory_space=pltpu.MemorySpace.VMEM)] * 3,
        out_specs=(pl.BlockSpec(memory_space=pltpu.MemorySpace.VMEM),) * 3,
    )(x, gamma_f, beta_f)
    return y, mean, var                                # y, (1,F), (1,F)


# ------------------------------ public wrapper ---------------------------------

def batch_norm_pallas(x, gamma, beta, moving_mean, moving_var,
                      eps=1e-5, momentum=0.9, training=True,
                      fused_max_bytes=_FUSED_MAX_BYTES,
                      block_bytes=_BLOCK_BYTES):
    """d2l-style batch norm forward. Returns (Y, new_moving_mean, new_moving_var).
    In inference mode (training=False) the moving stats are used and returned
    unchanged."""
    assert x.ndim in (2, 4)
    stat_shape = moving_mean.shape
    f32 = jnp.float32

    if x.ndim == 4:
        N, C, H, W = x.shape
        HW = H * W
        R = N * C
        L = N * HW
        g = gamma.reshape(C).astype(f32)
        b = beta.reshape(C).astype(f32)

        if not training:
            mean = moving_mean.reshape(C).astype(f32)
            var = moving_var.reshape(C).astype(f32)
            scale_c = g * jax.lax.rsqrt(var + eps)
            shift_c = b - mean * scale_c
            x2 = x.reshape(R, HW)
            scale_rows = jnp.tile(scale_c, N).reshape(R, 1)
            shift_rows = jnp.tile(shift_c, N).reshape(R, 1)
            y = _norm_2d(x2, scale_rows, shift_rows, block_bytes).reshape(N, C, H, W)
            return y, moving_mean, moving_var

        if x.size * 4 <= fused_max_bytes:
            # Whole tensor resident in VMEM: single fused call (1 read + 1 write).
            y3, mean, var = _fused_nchw(x.reshape(N, C, HW), g, b, eps)
            y = y3.reshape(N, C, H, W)
        else:
            # Two streaming passes over a flattened (N*C, HW) slab.
            x2 = x.reshape(R, HW)                       # free reshape, no transpose
            row_sum, row_sq = _stats_cols(x2, block_bytes)
            s_c = row_sum.reshape(N, C).sum(axis=0)     # (C,)
            q_c = row_sq.reshape(N, C).sum(axis=0)      # (C,)
            mean = s_c / L
            var = jnp.maximum(q_c / L - mean * mean, 0.0)   # biased, like the ref
            scale_c = g * jax.lax.rsqrt(var + eps)
            shift_c = b - mean * scale_c
            scale_rows = jnp.tile(scale_c, N).reshape(R, 1)
            shift_rows = jnp.tile(shift_c, N).reshape(R, 1)
            y = _norm_2d(x2, scale_rows, shift_rows, block_bytes).reshape(N, C, H, W)

        mean_out = mean.reshape(1, C, 1, 1)
        var_out = var.reshape(1, C, 1, 1)

    else:
        N, F = x.shape
        g = gamma.reshape(1, F).astype(f32)
        b = beta.reshape(1, F).astype(f32)

        if not training:
            mean = moving_mean.reshape(1, F).astype(f32)
            var = moving_var.reshape(1, F).astype(f32)
            scale = g * jax.lax.rsqrt(var + eps)
            shift = b - mean * scale
            y = _norm_fc(x, scale, shift, block_bytes)
            return y, moving_mean, moving_var

        if x.size * 4 <= fused_max_bytes:
            y, mean, var = _fused_nf(x, g, b, eps)
        else:
            s_f, q_f = _stats_fc(x, block_bytes)
            mean = (s_f / N).reshape(1, F)
            var = jnp.maximum(q_f / N - mean[0] * mean[0], 0.0).reshape(1, F)
            scale = g * jax.lax.rsqrt(var + eps)
            shift = b - mean * scale
            y = _norm_fc(x, scale, shift, block_bytes)

        mean_out = mean
        var_out = var

    # Moving-average update on tiny per-channel vectors: plain JAX.
    mm = moving_mean.astype(f32).reshape(mean_out.shape)
    mv = moving_var.astype(f32).reshape(var_out.shape)
    new_mm = momentum * mm + (1.0 - momentum) * mean_out
    new_mv = momentum * mv + (1.0 - momentum) * var_out
    return y, new_mm.reshape(stat_shape), new_mv.reshape(stat_shape)


class BatchNormPallas:
    """Mirror of the PyTorch BatchNorm module (deterministic init)."""

    def __init__(self, num_features, num_dims):
        shape = (1, num_features) if num_dims == 2 else (1, num_features, 1, 1)
        self.gamma = jnp.ones(shape, jnp.float32)
        self.beta = jnp.zeros(shape, jnp.float32)
        self.moving_mean = jnp.zeros(shape, jnp.float32)
        self.moving_var = jnp.ones(shape, jnp.float32)
        self.training = True

    def __call__(self, x):
        y, mm, mv = batch_norm_pallas(
            x, self.gamma, self.beta, self.moving_mean, self.moving_var,
            eps=1e-5, momentum=0.9, training=self.training)
        if self.training:
            self.moving_mean, self.moving_var = mm, mv
        return y


# --------------------------------- reference -----------------------------------

def _reference_bn(x, gamma, beta, mm, mv, eps=1e-5, momentum=0.9):
    """Pure-JAX reference mirroring the PyTorch training path."""
    if x.ndim == 2:
        mean = x.mean(axis=0)
        var = ((x - mean) ** 2).mean(axis=0)
    else:
        mean = x.mean(axis=(0, 2, 3), keepdims=True)
        var = ((x - mean) ** 2).mean(axis=(0, 2, 3), keepdims=True)
    x_hat = (x - mean) / jnp.sqrt(var + eps)
    y = gamma * x_hat + beta
    new_mm = momentum * mm + (1.0 - momentum) * mean
    new_mv = momentum * mv + (1.0 - momentum) * var
    return y, new_mm, new_mv


if __name__ == "__main__":
    key = jax.random.PRNGKey(0)
    ks = jax.random.split(key, 8)

    def _close(a, b, tol=1e-4):
        return bool(jnp.allclose(jnp.asarray(a).reshape(-1),
                                 jnp.asarray(b).reshape(-1),
                                 atol=tol, rtol=tol))

    # ---- 1) Conv-style NCHW, fused (VMEM-resident) path, via the module -----
    x4 = jax.random.normal(ks[0], (2, 4, 16, 16), dtype=jnp.float32)
    bn4 = BatchNormPallas(num_features=4, num_dims=4)
    y4 = jax.block_until_ready(bn4(x4))
    y4_ref, mm4_ref, mv4_ref = _reference_bn(
        x4, jnp.ones((1, 4, 1, 1)), jnp.zeros((1, 4, 1, 1)),
        jnp.zeros((1, 4, 1, 1)), jnp.ones((1, 4, 1, 1)))
    assert y4.shape == x4.shape and y4.dtype == x4.dtype
    assert _close(y4, y4_ref) and _close(bn4.moving_mean, mm4_ref) \
        and _close(bn4.moving_var, mv4_ref)

    # ---- 2) Same NCHW input, forced tiled (stats + norm) path ----------------
    g4 = 1.0 + 0.1 * jax.random.normal(ks[1], (1, 4, 1, 1), dtype=jnp.float32)
    b4 = 0.1 * jax.random.normal(ks[2], (1, 4, 1, 1), dtype=jnp.float32)
    y4t, mm4t, mv4t = batch_norm_pallas(
        x4, g4, b4, jnp.zeros((1, 4, 1, 1)), jnp.ones((1, 4, 1, 1)),
        fused_max_bytes=0)
    y4t = jax.block_until_ready(y4t)
    y4t_ref, mm4t_ref, mv4t_ref = _reference_bn(
        x4, g4, b4, jnp.zeros((1, 4, 1, 1)), jnp.ones((1, 4, 1, 1)))
    assert _close(y4t, y4t_ref) and _close(mm4t, mm4t_ref) and _close(mv4t, mv4t_ref)

    # ---- 3) Awkward NCHW shape, tiny blocks -> exercises ragged-tile masking -
    xa = jax.random.normal(ks[3], (3, 5, 6, 50), dtype=jnp.float32)
    ga = 1.0 + 0.1 * jax.random.normal(ks[4], (1, 5, 1, 1), dtype=jnp.float32)
    ba = 0.1 * jax.random.normal(ks[5], (1, 5, 1, 1), dtype=jnp.float32)
    ya, mma, mva = batch_norm_pallas(
        xa, ga, ba, jnp.zeros((1, 5, 1, 1)), jnp.ones((1, 5, 1, 1)),
        fused_max_bytes=0, block_bytes=4096)
    ya = jax.block_until_ready(ya)
    ya_ref, mma_ref, mva_ref = _reference_bn(
        xa, ga, ba, jnp.zeros((1, 5, 1, 1)), jnp.ones((1, 5, 1, 1)))
    assert _close(ya, ya_ref) and _close(mma, mma_ref) and _close(mva, mva_ref)

    # ---- 4) FC-style input, fused path, via the module -----------------------
    x2 = jax.random.normal(ks[6], (16, 32), dtype=jnp.float32)
    bn2 = BatchNormPallas(num_features=32, num_dims=2)
    y2 = jax.block_until_ready(bn2(x2))
    y2_ref, mm2_ref, mv2_ref = _reference_bn(
        x2, jnp.ones((1, 32)), jnp.zeros((1, 32)),
        jnp.zeros((1, 32)), jnp.ones((1, 32)))
    assert y2.shape == x2.shape and y2.dtype == x2.dtype
    assert _close(y2, y2_ref) and _close(bn2.moving_mean, mm2_ref) \
        and _close(bn2.moving_var, mv2_ref)

    # ---- 5) FC, ragged rows, forced tiled path --------------------------------
    x2b = jax.random.normal(ks[7], (19, 32), dtype=jnp.float32)
    y2b, mm2b, mv2b = batch_norm_pallas(
        x2b, jnp.ones((1, 32)), jnp.zeros((1, 32)),
        jnp.zeros((1, 32)), jnp.ones((1, 32)),
        fused_max_bytes=0, block_bytes=1024)
    y2b = jax.block_until_ready(y2b)
    y2b_ref, mm2b_ref, mv2b_ref = _reference_bn(
        x2b, jnp.ones((1, 32)), jnp.zeros((1, 32)),
        jnp.zeros((1, 32)), jnp.ones((1, 32)))
    assert _close(y2b, y2b_ref) and _close(mm2b, mm2b_ref) and _close(mv2b, mv2b_ref)

    # ---- 6) Inference mode (moving stats, no update) --------------------------
    mm_inf = 0.1 * jnp.arange(4, dtype=jnp.float32).reshape(1, 4, 1, 1)
    mv_inf = 1.0 + 0.25 * jnp.arange(4, dtype=jnp.float32).reshape(1, 4, 1, 1)
    y_inf, _, _ = batch_norm_pallas(x4, g4, b4, mm_inf, mv_inf, training=False)
    y_inf = jax.block_until_ready(y_inf)
    y_inf_ref = g4 * (x4 - mm_inf) / jnp.sqrt(mv_inf + 1e-5) + b4
    assert _close(y_inf, y_inf_ref)

    print("KERNEL_OK")
</pallas_src>

<mosaic_0001>
module attributes {stable_mosaic.version = 11 : i64} {
  func.func @_fused_nchw_kernel(%arg0: memref<2x4x256xf32, #tpu.memory_space<vmem>>, %arg1: memref<1x4x1xf32, #tpu.memory_space<vmem>>, %arg2: memref<1x4x1xf32, #tpu.memory_space<vmem>>, %arg3: memref<2x4x256xf32, #tpu.memory_space<vmem>>, %arg4: memref<4x1xf32, #tpu.memory_space<vmem>>, %arg5: memref<4x1xf32, #tpu.memory_space<vmem>>) attributes {dimension_semantics = [], scalar_prefetch = 0 : i64, scratch_operands = 0 : i64, tpu.core_type = #tpu.core_type<tc>} {
    %c0 = arith.constant 0 : index
    %c0_0 = arith.constant 0 : index
    %c0_1 = arith.constant 0 : index
    %0 = vector.load %arg0[%c0, %c0_0, %c0_1] : memref<2x4x256xf32, #tpu.memory_space<vmem>>, vector<2x4x256xf32>
    %cst = arith.constant dense<0.000000e+00> : vector<2x4xf32>
    %1 = vector.multi_reduction <add>, %0, %cst [2] : vector<2x4x256xf32> to vector<2x4xf32>
    %2 = vector.shape_cast %1 : vector<2x4xf32> to vector<2x4x1xf32>
    %cst_2 = arith.constant dense<0.000000e+00> : vector<4x1xf32>
    %3 = vector.multi_reduction <add>, %2, %cst_2 [0] : vector<2x4x1xf32> to vector<4x1xf32>
    %4 = vector.shape_cast %3 : vector<4x1xf32> to vector<1x4x1xf32>
    %cst_3 = arith.constant 0.001953125 : f32
    %5 = vector.broadcast %cst_3 : f32 to vector<1x4x1xf32>
    %6 = arith.mulf %4, %5 : vector<1x4x1xf32>
    %7 = vector.broadcast %6 : vector<1x4x1xf32> to vector<2x4x256xf32>
    %8 = arith.subf %0, %7 : vector<2x4x256xf32>
    %9 = arith.mulf %8, %8 : vector<2x4x256xf32>
    %cst_4 = arith.constant dense<0.000000e+00> : vector<2x4xf32>
    %10 = vector.multi_reduction <add>, %9, %cst_4 [2] : vector<2x4x256xf32> to vector<2x4xf32>
    %11 = vector.shape_cast %10 : vector<2x4xf32> to vector<2x4x1xf32>
    %cst_5 = arith.constant dense<0.000000e+00> : vector<4x1xf32>
    %12 = vector.multi_reduction <add>, %11, %cst_5 [0] : vector<2x4x1xf32> to vector<4x1xf32>
    %13 = vector.shape_cast %12 : vector<4x1xf32> to vector<1x4x1xf32>
    %cst_6 = arith.constant 0.001953125 : f32
    %14 = vector.broadcast %cst_6 : f32 to vector<1x4x1xf32>
    %15 = arith.mulf %13, %14 : vector<1x4x1xf32>
    %cst_7 = arith.constant 9.99999974E-6 : f32
    %16 = vector.broadcast %cst_7 : f32 to vector<1x4x1xf32>
    %17 = arith.addf %15, %16 : vector<1x4x1xf32>
    %18 = math.rsqrt %17 : vector<1x4x1xf32>
    %c0_8 = arith.constant 0 : index
    %c0_9 = arith.constant 0 : index
    %c0_10 = arith.constant 0 : index
    %19 = vector.load %arg1[%c0_8, %c0_9, %c0_10] : memref<1x4x1xf32, #tpu.memory_space<vmem>>, vector<1x4x1xf32>
    %20 = arith.mulf %18, %19 : vector<1x4x1xf32>
    %21 = vector.broadcast %20 : vector<1x4x1xf32> to vector<2x4x256xf32>
    %22 = arith.mulf %8, %21 : vector<2x4x256xf32>
    %c0_11 = arith.constant 0 : index
    %c0_12 = arith.constant 0 : index
    %c0_13 = arith.constant 0 : index
    %23 = vector.load %arg2[%c0_11, %c0_12, %c0_13] : memref<1x4x1xf32, #tpu.memory_space<vmem>>, vector<1x4x1xf32>
    %24 = vector.broadcast %23 : vector<1x4x1xf32> to vector<2x4x256xf32>
    %25 = arith.addf %22, %24 : vector<2x4x256xf32>
    %c0_14 = arith.constant 0 : index
    %c0_15 = arith.constant 0 : index
    %c0_16 = arith.constant 0 : index
    %26 = vector.load %arg3[%c0_14, %c0_15, %c0_16] : memref<2x4x256xf32, #tpu.memory_space<vmem>>, vector<2x4x256xf32>
    tpu.vector_store %arg3[%c0_14, %c0_15, %c0_16], %25 {strides = array<i32>} : memref<2x4x256xf32, #tpu.memory_space<vmem>>, vector<2x4x256xf32>,
    %27 = vector.shape_cast %6 : vector<1x4x1xf32> to vector<4x1xf32>
    %c0_17 = arith.constant 0 : index
    %c0_18 = arith.constant 0 : index
    %28 = vector.load %arg4[%c0_17, %c0_18] : memref<4x1xf32, #tpu.memory_space<vmem>>, vector<4x1xf32>
    tpu.vector_store %arg4[%c0_17, %c0_18], %27 {strides = array<i32>} : memref<4x1xf32, #tpu.memory_space<vmem>>, vector<4x1xf32>,
    %29 = vector.shape_cast %15 : vector<1x4x1xf32> to vector<4x1xf32>
    %c0_19 = arith.constant 0 : index
    %c0_20 = arith.constant 0 : index
    %30 = vector.load %arg5[%c0_19, %c0_20] : memref<4x1xf32, #tpu.memory_space<vmem>>, vector<4x1xf32>
    tpu.vector_store %arg5[%c0_19, %c0_20], %29 {strides = array<i32>} : memref<4x1xf32, #tpu.memory_space<vmem>>, vector<4x1xf32>,
    return
  }
}

</mosaic_0001>

<llo_original>
// kernel: tpu_custom_call.1
$region0: #{tpu_custom_call.1}
  #allocation0 [shape = 'u32[]', space=smem, size = 0x4, offset = 0x4, fixed_abs, tag = 'smem constant byte address 0x4 - core index']
  #allocation1 [shape = 'u32[144,128]{1,0:T(1,128)}', space=vmem, size = 0x12000, scoped, tag = 'internal scratch']
  %s0 = inlined_call_operand.hbm [shape: f32[2,4,256], index: 0, kind: input, shape index: {}]
  %s1 = inlined_call_operand.vmem [shape: f32[1,4,1], index: 1, kind: input, shape index: {}]
  %s2 = inlined_call_operand.vmem [shape: f32[1,4,1], index: 2, kind: input, shape index: {}]
  %s3 = inlined_call_operand.hbm [shape: f32[2,4,256], index: 3, kind: output, shape index: {0}]
  %s4 = inlined_call_operand.vmem [shape: f32[4,1], index: 4, kind: output, shape index: {1}]
  %s5 = inlined_call_operand.vmem [shape: f32[4,1], index: 5, kind: output, shape index: {2}]
  %6 = xla_tuple %s3, %s4, %s5
  %s7 = sld [smem:[#allocation0]]
  $region42: #{tpu_custom_call.1} parent=0
    _
  %s9 = ssub.s32 1, %s7
  %s10 = scalar_select 0, %s9, %s7
  $region1: #{tpu_custom_call.1} parent=0
    #allocation2 [shape = 'u8[8192]{0}', space=vmem, size = 0x2000, scoped, tag = 'input window, operand 0, single buffered']
    #allocation3 [shape = 's32[1]{0}', space=sflag, size = 0x4, scoped, tag = 'scoped memory for tpu_custom_call.1']
    #allocation4 [shape = 's32[1]{0}', space=sflag, size = 0x4, scoped, tag = 'scoped memory for tpu_custom_call.1']
    #allocation5 [shape = 'u8[8192]{0}', space=vmem, size = 0x2000, scoped, tag = 'output window, operand 0, single buffered']
    %11 = vsyncpa [#allocation3], 0
    %12 = vsyncpa [#allocation4], 0
    // Predicated region
    $region2: #{tpu_custom_call.1} parent=1 // pred_check
      _
    $region3: #{tpu_custom_call.1} parent=1 // pred_check_branch
      %14 = sbr.rel (0) target = $region5
    $region4: #{tpu_custom_call.1} parent=1 // pred_region
      %s16 = ssub.s32 256, 256
      %17 = vsyncadd [#allocation3], %s16
      %s18 = sshll.u32 [#allocation2], 4
      %s19 = int_to_ptr.vmem [resolvable:$true] %s18
      %24 = dma.hbm_to_vmem [thread:$0]  %s0, 256, %s19, [#allocation3], 128, 128, 8
    $region5: #{tpu_custom_call.1} parent=1 // pred_fallthru
      _
    // Predicated region
    $region6: #{tpu_custom_call.1} parent=1 // pred_check
      _
    $region7: #{tpu_custom_call.1} parent=1 // pred_check_branch
      %26 = sbr.rel (0) target = $region9
    $region8: #{tpu_custom_call.1} parent=1 // pred_region
      _
    $region9: #{tpu_custom_call.1} parent=1 // pred_fallthru
      _
    // Predicated region
    $region10: #{tpu_custom_call.1} parent=1 // pred_check
      _
    $region11: #{tpu_custom_call.1} parent=1 // pred_check_branch
      %28 = sbr.rel (0) target = $region13
    $region12: #{tpu_custom_call.1} parent=1 // pred_region
      _
    $region13: #{tpu_custom_call.1} parent=1 // pred_fallthru
      _
    // Predicated region
    $region14: #{tpu_custom_call.1} parent=1 // pred_check
      _
    $region15: #{tpu_custom_call.1} parent=1 // pred_check_branch
      %30 = sbr.rel (0) target = $region17
    $region16: #{tpu_custom_call.1} parent=1 // pred_region
      %31 = dma.done [#allocation3], 256
    $region17: #{tpu_custom_call.1} parent=1 // pred_fallthru
      _
    %v32 = vld [vmem:[#allocation2] sm:$0xff]
    %v33 = vld [vmem:[#allocation2 + $0x8] sm:$0xff]
    %v36 = vcombine.high %v32, %v32
    %v37 = vcombine.high %v33, %v33
    %vm40 = vcmask 1043456
    %v41 = vsel %vm40, %v32, 0.0
    %v42 = vsel %vm40, %v36, 0.0
    %v43 = vadd.f32 %v41, %v42
    %44 = vadd.xlane.f32.xlu0 %v43
    %v45 = vpop.xlane.xlu0 %44
    %v46 = vsel %vm40, %v33, 0.0
    %v47 = vsel %vm40, %v37, 0.0
    %v48 = vadd.f32 %v46, %v47
    %49 = vadd.xlane.f32.xlu0 %v48
    %v50 = vpop.xlane.xlu0 %49
    %v51 = vsel %vm40, %v45, 0.0
    %v52 = vsel %vm40, %v50, 0.0
    %v53 = vadd.f32 %v51, %v52
    %v54 = vmul.f32 %v53, 0.001953125
    %v57 = vunpack.c.l.s4 839922192
    %v58 = vunpack.c.0.s8 %v57
    %v59 = vlaneseq
    %v60 = vshrl.u32 %v59, 7
    %v61 = vsub.s32 %v58, %v60
    %v62 = vrot.slane %v54, %v61
    %v64 = vsub.f32 %v32, %v62
    %v65 = vsub.f32 %v33, %v62
    %v66 = vmul.f32 %v64, %v64
    %v67 = vmul.f32 %v65, %v65
    %v70 = vcombine.high %v66, %v66
    %v71 = vcombine.high %v67, %v67
    %v74 = vsel %vm40, %v66, 0.0
    %v75 = vsel %vm40, %v70, 0.0
    %v76 = vadd.f32 %v74, %v75
    %77 = vadd.xlane.f32.xlu0 %v76
    %v78 = vpop.xlane.xlu0 %77
    %v79 = vsel %vm40, %v67, 0.0
    %v80 = vsel %vm40, %v71, 0.0
    %v81 = vadd.f32 %v79, %v80
    %82 = vadd.xlane.f32.xlu0 %v81
    %v83 = vpop.xlane.xlu0 %82
    %v84 = vsel %vm40, %v78, 0.0
    %v85 = vsel %vm40, %v83, 0.0
    %v86 = vadd.f32 %v84, %v85
    %v87 = vmul.f32 %v86, 0.001953125
    %v88 = vadd.f32 %v87, 1e-05
    %v89 = vrsqrt.pop %v88
    %v90 = vld [vmem:[%s1] sm:$0xf]
    %v91 = vmul.f32 %v89, %v90
    %93 = vset.pattern.permute.xlu0 0
    %94 = vperm.xlu0 %93, %v91
    %v95 = vpop.permute.xlu0 %94
    %v97 = vunpack.c.l.s4 839922192
    %v98 = vunpack.c.0.s8 %v97
    %v99 = vlaneseq
    %v100 = vshrl.u32 %v99, 7
    %v101 = vsub.s32 %v98, %v100
    %v102 = vrot.slane %v95, %v101
    %v104 = vmul.f32 %v64, %v102
    %v105 = vmul.f32 %v65, %v102
    %v106 = vld [vmem:[%s2] sm:$0xf]
    %108 = vset.pattern.permute.xlu0 0
    %109 = vperm.xlu0 %108, %v106
    %v110 = vpop.permute.xlu0 %109
    %v112 = vunpack.c.l.s4 839922192
    %v113 = vunpack.c.0.s8 %v112
    %v114 = vlaneseq
    %v115 = vshrl.u32 %v114, 7
    %v116 = vsub.s32 %v113, %v115
    %v117 = vrot.slane %v110, %v116
    %v119 = vadd.f32 %v104, %v117
    %v120 = vadd.f32 %v105, %v117
    %121 = vst [vmem:[#allocation5] sm:$0xff] %v119
    %122 = vst [vmem:[#allocation5 + $0x8] sm:$0xff] %v120
    %vm123 = vcmask 3072
    %124 = vst.msk [vmem:[%s4] sm:$0xf] %vm123, %v54
    %125 = vst.msk [vmem:[%s5] sm:$0xf] %vm123, %v87
    // Predicated region
    $region18: #{tpu_custom_call.1} parent=1 // pred_check
      _
    $region19: #{tpu_custom_call.1} parent=1 // pred_check_branch
      %127 = sbr.rel (0) target = $region21
    $region20: #{tpu_custom_call.1} parent=1 // pred_region
      %s129 = ssub.s32 256, 256
      %130 = vsyncadd [#allocation4], %s129
      %s131 = sshll.u32 [#allocation5], 4
      %s132 = int_to_ptr.vmem [resolvable:$true] %s131
      %137 = dma.vmem_to_hbm [thread:$0]  %s132, 256, %s3, [#allocation4], 128, 128, 8
    $region21: #{tpu_custom_call.1} parent=1 // pred_fallthru
      _
    // Predicated region
    $region22: #{tpu_custom_call.1} parent=1 // pred_check
      _
    $region23: #{tpu_custom_call.1} parent=1 // pred_check_branch
      %139 = sbr.rel (0) target = $region25
    $region24: #{tpu_custom_call.1} parent=1 // pred_region
      _
    $region25: #{tpu_custom_call.1} parent=1 // pred_fallthru
      _
    // Predicated region
    $region26: #{tpu_custom_call.1} parent=1 // pred_check
      _
    $region27: #{tpu_custom_call.1} parent=1 // pred_check_branch
      %141 = sbr.rel (0) target = $region29
    $region28: #{tpu_custom_call.1} parent=1 // pred_region
      _
    $region29: #{tpu_custom_call.1} parent=1 // pred_fallthru
      _
    // Predicated region
    $region30: #{tpu_custom_call.1} parent=1 // pred_check
      _
    $region31: #{tpu_custom_call.1} parent=1 // pred_check_branch
      %143 = sbr.rel (0) target = $region33
    $region32: #{tpu_custom_call.1} parent=1 // pred_region
      %144 = dma.done [#allocation4], 256
    $region33: #{tpu_custom_call.1} parent=1 // pred_fallthru
      _
    // Predicated region
    $region34: #{tpu_custom_call.1} parent=1 // pred_check
      _
    $region35: #{tpu_custom_call.1} parent=1 // pred_check_branch
      %146 = sbr.rel (0) target = $region37
    $region36: #{tpu_custom_call.1} parent=1 // pred_region
      _
    $region37: #{tpu_custom_call.1} parent=1 // pred_fallthru
      _
    // Predicated region
    $region38: #{tpu_custom_call.1} parent=1 // pred_check
      _
    $region39: #{tpu_custom_call.1} parent=1 // pred_check_branch
      %148 = sbr.rel (0) target = $region41
    $region40: #{tpu_custom_call.1} parent=1 // pred_region
      _
    $region41: #{tpu_custom_call.1} parent=1 // pred_fallthru
      _
    %149 = vsyncpa [#allocation3], 1
    %150 = vsyncpa [#allocation4], 1

</llo_original>
